<compile_context>
chip_gen: v5e
topology: v5e:2x2
jax: 0.10.0
libtpu: 0.0.40
codegen_flags: <defaults>
</compile_context>

<pallas_src>
import functools

import jax
import jax.numpy as jnp
from jax.experimental import pallas as pl
from jax.experimental.pallas import tpu as pltpu

IN_PAD = 8        # pad the 3 input features to one f32 sublane
LANE = 128        # lane width for the fused head output
MAX_TILE_B = 512  # batch tile (fits comfortably in 32 MiB scoped VMEM on all gens)


def _round_up(n, m):
    return (n + m - 1) // m * m


def _starnet_kernel(x_ref,
                    w1_ref, b1_ref,
                    w2_ref, b2_ref,
                    w3_ref, b3_ref,
                    wh_ref, bh_ref,
                    out_ref):
    # Trunk: three Linear + ReLU layers. Matmuls run in bf16 on the MXU with
    # f32 accumulation; bias adds and ReLU stay in f32 (VPU-friendly on v5e).
    x = x_ref[...].astype(jnp.bfloat16)
    h = jnp.dot(x, w1_ref[...], preferred_element_type=jnp.float32) + b1_ref[...]
    h = jnp.maximum(h, 0.0).astype(jnp.bfloat16)
    h = jnp.dot(h, w2_ref[...], preferred_element_type=jnp.float32) + b2_ref[...]
    h = jnp.maximum(h, 0.0).astype(jnp.bfloat16)
    h = jnp.dot(h, w3_ref[...], preferred_element_type=jnp.float32) + b3_ref[...]
    h = jnp.maximum(h, 0.0).astype(jnp.bfloat16)
    # All three heads fused into one matmul + one lane-dense f32 output tile.
    out_ref[...] = (jnp.dot(h, wh_ref[...], preferred_element_type=jnp.float32)
                    + bh_ref[...])


def prepare_params(params, num_colors, num_classes):
    """Transpose / pad / fuse / cast the PyTorch-layout params ONCE.

    params holds PyTorch-convention weights (out, in) and biases (out,).
    Returns kernel-ready arrays; call once and reuse (keeps the per-inference
    wrapper free of transpose/pad glue).
    """
    def to_mxu(w):  # (out, in) -> (in, out), bf16 matmul operand
        return jnp.transpose(w.astype(jnp.float32)).astype(jnp.bfloat16)

    def bias(b):    # (out,) -> (1, out), f32
        return b.astype(jnp.float32)[None, :]

    w1 = to_mxu(params["fc1_w"])                                  # (3, 64)
    w1 = jnp.pad(w1, ((0, IN_PAD - w1.shape[0]), (0, 0)))         # (8, 64)
    b1 = bias(params["fc1_b"])
    w2 = to_mxu(params["fc2_w"])                                  # (64, 128)
    b2 = bias(params["fc2_b"])
    w3 = to_mxu(params["fc3_w"])                                  # (128, 64)
    b3 = bias(params["fc3_b"])

    # Fuse the three heads: output columns = [type | color | class], zero-padded
    # to a lane multiple so the kernel emits one unmasked lane-dense store.
    head_dim = 1 + num_colors + num_classes
    head_pad = _round_up(head_dim, LANE)
    wh = jnp.concatenate([params["fc_out_type_w"],
                          params["fc_out_color_w"],
                          params["fc_out_class_w"]], axis=0)      # (head_dim, 64)
    wh = to_mxu(wh)                                               # (64, head_dim)
    wh = jnp.pad(wh, ((0, 0), (0, head_pad - head_dim)))          # (64, head_pad)
    bh = jnp.concatenate([params["fc_out_type_b"],
                          params["fc_out_color_b"],
                          params["fc_out_class_b"]], axis=0)
    bh = jnp.pad(bias(bh), ((0, 0), (0, head_pad - head_dim)))    # (1, head_pad)

    return {"w1": w1, "b1": b1, "w2": w2, "b2": b2, "w3": w3, "b3": b3,
            "wh": wh, "bh": bh}


@functools.partial(jax.jit, static_argnames=("num_colors", "num_classes"))
def starnet_forward(x, prepped, *, num_colors, num_classes):
    """StarNet forward in one batch-gridded Pallas kernel.

    x: (B, 3) float32.  prepped: output of prepare_params().
    Returns (star_type (B,1), star_color (B,num_colors), spectral_class (B,num_classes)).
    """
    B = x.shape[0]
    head_dim = 1 + num_colors + num_classes
    head_pad = _round_up(head_dim, LANE)

    tile_b = min(MAX_TILE_B, _round_up(B, 8))
    b_pad = _round_up(B, tile_b)

    # Pad batch to a tile multiple and features 3 -> 8 (zeros are a no-op in the matmul).
    x_p = jnp.pad(x.astype(jnp.float32),
                  ((0, b_pad - B), (0, IN_PAD - x.shape[1])))

    w1, b1 = prepped["w1"], prepped["b1"]
    w2, b2 = prepped["w2"], prepped["b2"]
    w3, b3 = prepped["w3"], prepped["b3"]
    wh, bh = prepped["wh"], prepped["bh"]

    def full_spec(a):
        # Whole-array block with a constant index_map -> stays VMEM-resident.
        return pl.BlockSpec(a.shape, lambda i: (0, 0))

    flops = 2 * b_pad * (IN_PAD * 64 + 64 * 128 + 128 * 64 + 64 * head_pad)
    bytes_accessed = (
        x_p.size * 4 + b_pad * head_pad * 4
        + sum(a.size * a.dtype.itemsize for a in (w1, w2, w3, wh))
        + sum(a.size * 4 for a in (b1, b2, b3, bh)))

    out = pl.pallas_call(
        _starnet_kernel,
        out_shape=jax.ShapeDtypeStruct((b_pad, head_pad), jnp.float32),
        grid=(b_pad // tile_b,),
        in_specs=[
            pl.BlockSpec((tile_b, IN_PAD), lambda i: (i, 0)),   # x tile
            full_spec(w1), full_spec(b1),
            full_spec(w2), full_spec(b2),
            full_spec(w3), full_spec(b3),
            full_spec(wh), full_spec(bh),
        ],
        out_specs=pl.BlockSpec((tile_b, head_pad), lambda i: (i, 0)),
        compiler_params=pltpu.CompilerParams(
            dimension_semantics=("parallel",),
            vmem_limit_bytes=32 * 1024 * 1024),
        cost_estimate=pl.CostEstimate(
            flops=flops, transcendentals=0, bytes_accessed=bytes_accessed),
    )(x_p, w1, b1, w2, b2, w3, b3, wh, bh)

    star_type = out[:B, 0:1]
    star_color = out[:B, 1:1 + num_colors]
    spectral_class = out[:B, 1 + num_colors:head_dim]
    return star_type, star_color, spectral_class


def init_params(key, num_colors, num_classes):
    """Deterministic synthetic init mimicking nn.Linear shapes (out, in)."""
    shapes = {
        "fc1": (64, 3),
        "fc2": (128, 64),
        "fc3": (64, 128),
        "fc_out_type": (1, 64),
        "fc_out_color": (num_colors, 64),
        "fc_out_class": (num_classes, 64),
    }
    params = {}
    for name, (out_f, in_f) in shapes.items():
        key, kw, kb = jax.random.split(key, 3)
        bound = 1.0 / jnp.sqrt(in_f)
        params[f"{name}_w"] = jax.random.uniform(
            kw, (out_f, in_f), jnp.float32, minval=-bound, maxval=bound)
        params[f"{name}_b"] = jax.random.uniform(
            kb, (out_f,), jnp.float32, minval=-bound, maxval=bound)
    return params


def reference_forward(x, params):
    """Pure-JAX (f32) reference matching the PyTorch forward exactly."""
    def lin(h, w, b):
        return h @ w.T + b
    h = jax.nn.relu(lin(x, params["fc1_w"], params["fc1_b"]))
    h = jax.nn.relu(lin(h, params["fc2_w"], params["fc2_b"]))
    h = jax.nn.relu(lin(h, params["fc3_w"], params["fc3_b"]))
    return (lin(h, params["fc_out_type_w"], params["fc_out_type_b"]),
            lin(h, params["fc_out_color_w"], params["fc_out_color_b"]),
            lin(h, params["fc_out_class_w"], params["fc_out_class_b"]))


if __name__ == "__main__":
    NUM_COLORS = 4
    NUM_CLASSES = 7
    BATCH = 8

    key = jax.random.PRNGKey(0)
    key, kx = jax.random.split(key)
    x = jax.random.normal(kx, (BATCH, 3), jnp.float32)
    params = init_params(key, NUM_COLORS, NUM_CLASSES)

    prepped = prepare_params(params, NUM_COLORS, NUM_CLASSES)  # one-time prep
    star_type, star_color, spectral_class = starnet_forward(
        x, prepped, num_colors=NUM_COLORS, num_classes=NUM_CLASSES)
    jax.block_until_ready((star_type, star_color, spectral_class))

    # Sanity check against the pure-f32 JAX reference. Kernel uses bf16 matmul
    # operands with f32 accumulation, so tolerance is loosened accordingly.
    ref_type, ref_color, ref_class = reference_forward(x, params)
    assert star_type.shape == (BATCH, 1)
    assert star_color.shape == (BATCH, NUM_COLORS)
    assert spectral_class.shape == (BATCH, NUM_CLASSES)
    assert jnp.allclose(star_type, ref_type, atol=5e-2, rtol=5e-2)
    assert jnp.allclose(star_color, ref_color, atol=5e-2, rtol=5e-2)
    assert jnp.allclose(spectral_class, ref_class, atol=5e-2, rtol=5e-2)

    print("KERNEL_OK")
</pallas_src>

<mosaic_0001>
module attributes {stable_mosaic.version = 11 : i64} {
  func.func @_starnet_kernel(%arg0: i32, %arg1: memref<8x8xf32, #tpu.memory_space<vmem>>, %arg2: memref<8x64xbf16, #tpu.memory_space<vmem>>, %arg3: memref<1x64xf32, #tpu.memory_space<vmem>>, %arg4: memref<64x128xbf16, #tpu.memory_space<vmem>>, %arg5: memref<1x128xf32, #tpu.memory_space<vmem>>, %arg6: memref<128x64xbf16, #tpu.memory_space<vmem>>, %arg7: memref<1x64xf32, #tpu.memory_space<vmem>>, %arg8: memref<64x128xbf16, #tpu.memory_space<vmem>>, %arg9: memref<1x128xf32, #tpu.memory_space<vmem>>, %arg10: memref<8x128xf32, #tpu.memory_space<vmem>>) attributes {dimension_semantics = [#tpu.dimension_semantics<parallel>], iteration_bounds = array<i64: 1>, scalar_prefetch = 0 : i64, scratch_operands = 0 : i64, tpu.core_type = #tpu.core_type<tc>, window_params = [{transform_indices = @transform_0, window_bounds = array<i64: 8, 8>}, {pipeline_mode = #tpu.pipeline_mode<synchronous>, transform_indices = @transform_1, window_bounds = array<i64: 8, 64>}, {pipeline_mode = #tpu.pipeline_mode<synchronous>, transform_indices = @transform_2, window_bounds = array<i64: 1, 64>}, {pipeline_mode = #tpu.pipeline_mode<synchronous>, transform_indices = @transform_3, window_bounds = array<i64: 64, 128>}, {pipeline_mode = #tpu.pipeline_mode<synchronous>, transform_indices = @transform_4, window_bounds = array<i64: 1, 128>}, {pipeline_mode = #tpu.pipeline_mode<synchronous>, transform_indices = @transform_5, window_bounds = array<i64: 128, 64>}, {pipeline_mode = #tpu.pipeline_mode<synchronous>, transform_indices = @transform_6, window_bounds = array<i64: 1, 64>}, {pipeline_mode = #tpu.pipeline_mode<synchronous>, transform_indices = @transform_7, window_bounds = array<i64: 64, 128>}, {pipeline_mode = #tpu.pipeline_mode<synchronous>, transform_indices = @transform_8, window_bounds = array<i64: 1, 128>}, {transform_indices = @transform_9, window_bounds = array<i64: 8, 128>}]} {
    %c0 = arith.constant 0 : index
    %c0_0 = arith.constant 0 : index
    %0 = vector.load %arg1[%c0, %c0_0] : memref<8x8xf32, #tpu.memory_space<vmem>>, vector<8x8xf32>
    %1 = arith.truncf %0 : vector<8x8xf32> to vector<8x8xbf16>
    %c0_1 = arith.constant 0 : index
    %c0_2 = arith.constant 0 : index
    %2 = vector.load %arg2[%c0_1, %c0_2] : memref<8x64xbf16, #tpu.memory_space<vmem>>, vector<8x64xbf16>
    %cst = arith.constant dense<0.000000e+00> : vector<8x64xf32>
    %3 = tpu.matmul %1, %2, %cst {dimension_numbers = #tpu.dot_dimension_numbers<[1], [0], [0], [1], [0, 0, 1, 1], [], []>} : vector<8x8xbf16>, vector<8x64xbf16>, vector<8x64xf32> -> vector<8x64xf32>
    %c0_3 = arith.constant 0 : index
    %c0_4 = arith.constant 0 : index
    %4 = vector.load %arg3[%c0_3, %c0_4] : memref<1x64xf32, #tpu.memory_space<vmem>>, vector<1x64xf32>
    %5 = vector.broadcast %4 : vector<1x64xf32> to vector<8x64xf32>
    %6 = arith.addf %3, %5 : vector<8x64xf32>
    %cst_5 = arith.constant 0.000000e+00 : f32
    %7 = vector.broadcast %cst_5 : f32 to vector<8x64xf32>
    %8 = arith.maximumf %6, %7 : vector<8x64xf32>
    %9 = arith.truncf %8 : vector<8x64xf32> to vector<8x64xbf16>
    %c0_6 = arith.constant 0 : index
    %c0_7 = arith.constant 0 : index
    %10 = vector.load %arg4[%c0_6, %c0_7] : memref<64x128xbf16, #tpu.memory_space<vmem>>, vector<64x128xbf16>
    %cst_8 = arith.constant dense<0.000000e+00> : vector<8x128xf32>
    %11 = tpu.matmul %9, %10, %cst_8 {dimension_numbers = #tpu.dot_dimension_numbers<[1], [0], [0], [1], [0, 0, 1, 1], [], []>} : vector<8x64xbf16>, vector<64x128xbf16>, vector<8x128xf32> -> vector<8x128xf32>
    %c0_9 = arith.constant 0 : index
    %c0_10 = arith.constant 0 : index
    %12 = vector.load %arg5[%c0_9, %c0_10] : memref<1x128xf32, #tpu.memory_space<vmem>>, vector<1x128xf32>
    %13 = vector.broadcast %12 : vector<1x128xf32> to vector<8x128xf32>
    %14 = arith.addf %11, %13 : vector<8x128xf32>
    %cst_11 = arith.constant 0.000000e+00 : f32
    %15 = vector.broadcast %cst_11 : f32 to vector<8x128xf32>
    %16 = arith.maximumf %14, %15 : vector<8x128xf32>
    %17 = arith.truncf %16 : vector<8x128xf32> to vector<8x128xbf16>
    %c0_12 = arith.constant 0 : index
    %c0_13 = arith.constant 0 : index
    %18 = vector.load %arg6[%c0_12, %c0_13] : memref<128x64xbf16, #tpu.memory_space<vmem>>, vector<128x64xbf16>
    %cst_14 = arith.constant dense<0.000000e+00> : vector<8x64xf32>
    %19 = tpu.matmul %17, %18, %cst_14 {dimension_numbers = #tpu.dot_dimension_numbers<[1], [0], [0], [1], [0, 0, 1, 1], [], []>} : vector<8x128xbf16>, vector<128x64xbf16>, vector<8x64xf32> -> vector<8x64xf32>
    %c0_15 = arith.constant 0 : index
    %c0_16 = arith.constant 0 : index
    %20 = vector.load %arg7[%c0_15, %c0_16] : memref<1x64xf32, #tpu.memory_space<vmem>>, vector<1x64xf32>
    %21 = vector.broadcast %20 : vector<1x64xf32> to vector<8x64xf32>
    %22 = arith.addf %19, %21 : vector<8x64xf32>
    %cst_17 = arith.constant 0.000000e+00 : f32
    %23 = vector.broadcast %cst_17 : f32 to vector<8x64xf32>
    %24 = arith.maximumf %22, %23 : vector<8x64xf32>
    %25 = arith.truncf %24 : vector<8x64xf32> to vector<8x64xbf16>
    %c0_18 = arith.constant 0 : index
    %c0_19 = arith.constant 0 : index
    %26 = vector.load %arg8[%c0_18, %c0_19] : memref<64x128xbf16, #tpu.memory_space<vmem>>, vector<64x128xbf16>
    %cst_20 = arith.constant dense<0.000000e+00> : vector<8x128xf32>
    %27 = tpu.matmul %25, %26, %cst_20 {dimension_numbers = #tpu.dot_dimension_numbers<[1], [0], [0], [1], [0, 0, 1, 1], [], []>} : vector<8x64xbf16>, vector<64x128xbf16>, vector<8x128xf32> -> vector<8x128xf32>
    %c0_21 = arith.constant 0 : index
    %c0_22 = arith.constant 0 : index
    %28 = vector.load %arg9[%c0_21, %c0_22] : memref<1x128xf32, #tpu.memory_space<vmem>>, vector<1x128xf32>
    %29 = vector.broadcast %28 : vector<1x128xf32> to vector<8x128xf32>
    %30 = arith.addf %27, %29 : vector<8x128xf32>
    %c0_23 = arith.constant 0 : index
    %c0_24 = arith.constant 0 : index
    %31 = vector.load %arg10[%c0_23, %c0_24] : memref<8x128xf32, #tpu.memory_space<vmem>>, vector<8x128xf32>
    tpu.vector_store %arg10[%c0_23, %c0_24], %30 {strides = array<i32>} : memref<8x128xf32, #tpu.memory_space<vmem>>, vector<8x128xf32>,
    return
  }
  func.func @transform_0(%arg0: i32) -> (i32, i32) {
    %c0_i32 = arith.constant 0 : i32
    %c0_i32_0 = arith.constant 0 : i32
    return %arg0, %c0_i32 : i32, i32
  }
  func.func @transform_1(%arg0: i32) -> (i32, i32) {
    %c0_i32 = arith.constant 0 : i32
    %c0_i32_0 = arith.constant 0 : i32
    %c0_i32_1 = arith.constant 0 : i32
    return %c0_i32, %c0_i32_0 : i32, i32
  }
  func.func @transform_2(%arg0: i32) -> (i32, i32) {
    %c0_i32 = arith.constant 0 : i32
    %c0_i32_0 = arith.constant 0 : i32
    %c0_i32_1 = arith.constant 0 : i32
    return %c0_i32, %c0_i32_0 : i32, i32
  }
  func.func @transform_3(%arg0: i32) -> (i32, i32) {
    %c0_i32 = arith.constant 0 : i32
    %c0_i32_0 = arith.constant 0 : i32
    %c0_i32_1 = arith.constant 0 : i32
    return %c0_i32, %c0_i32_0 : i32, i32
  }
  func.func @transform_4(%arg0: i32) -> (i32, i32) {
    %c0_i32 = arith.constant 0 : i32
    %c0_i32_0 = arith.constant 0 : i32
    %c0_i32_1 = arith.constant 0 : i32
    return %c0_i32, %c0_i32_0 : i32, i32
  }
  func.func @transform_5(%arg0: i32) -> (i32, i32) {
    %c0_i32 = arith.constant 0 : i32
    %c0_i32_0 = arith.constant 0 : i32
    %c0_i32_1 = arith.constant 0 : i32
    return %c0_i32, %c0_i32_0 : i32, i32
  }
  func.func @transform_6(%arg0: i32) -> (i32, i32) {
    %c0_i32 = arith.constant 0 : i32
    %c0_i32_0 = arith.constant 0 : i32
    %c0_i32_1 = arith.constant 0 : i32
    return %c0_i32, %c0_i32_0 : i32, i32
  }
  func.func @transform_7(%arg0: i32) -> (i32, i32) {
    %c0_i32 = arith.constant 0 : i32
    %c0_i32_0 = arith.constant 0 : i32
    %c0_i32_1 = arith.constant 0 : i32
    return %c0_i32, %c0_i32_0 : i32, i32
  }
  func.func @transform_8(%arg0: i32) -> (i32, i32) {
    %c0_i32 = arith.constant 0 : i32
    %c0_i32_0 = arith.constant 0 : i32
    %c0_i32_1 = arith.constant 0 : i32
    return %c0_i32, %c0_i32_0 : i32, i32
  }
  func.func @transform_9(%arg0: i32) -> (i32, i32) {
    %c0_i32 = arith.constant 0 : i32
    %c0_i32_0 = arith.constant 0 : i32
    return %arg0, %c0_i32 : i32, i32
  }
}

</mosaic_0001>

<llo_original>
// kernel: starnet_forward.1
$region0: #{starnet_forward.1}
  #allocation0 [shape = 'u32[]', space=smem, size = 0x4, offset = 0x4, fixed_abs, tag = 'smem constant byte address 0x4 - core index']
  #allocation1 [shape = 'u32[72,128]{1,0:T(1,128)}', space=vmem, size = 0x9000, scoped, tag = 'internal scratch']
  %s0 = inlined_call_operand.vmem [shape: f32[8,8], index: 0, kind: input, shape index: {}]
  %s1 = inlined_call_operand.vmem [shape: bf16[8,64], index: 1, kind: input, shape index: {}]
  %s2 = inlined_call_operand.vmem [shape: f32[1,64], index: 2, kind: input, shape index: {}]
  %s3 = inlined_call_operand.vmem [shape: bf16[64,128], index: 3, kind: input, shape index: {}]
  %s4 = inlined_call_operand.vmem [shape: f32[1,128], index: 4, kind: input, shape index: {}]
  %s5 = inlined_call_operand.vmem [shape: bf16[128,64], index: 5, kind: input, shape index: {}]
  %s6 = inlined_call_operand.vmem [shape: f32[1,64], index: 6, kind: input, shape index: {}]
  %s7 = inlined_call_operand.vmem [shape: bf16[64,128], index: 7, kind: input, shape index: {}]
  %s8 = inlined_call_operand.vmem [shape: f32[1,128], index: 8, kind: input, shape index: {}]
  %s9 = inlined_call_operand.vmem [shape: f32[8,128], index: 9, kind: output, shape index: {}]
  %s10 = sld [smem:[#allocation0]]
  $region46: #{starnet_forward.1} parent=0
    _
  %s12 = ssub.s32 1, %s10
  %s13 = scalar_select 0, %s12, %s10
  // Predicated region
  $region2: #{starnet_forward.1} parent=0 // pred_check
    _
  $region3: #{starnet_forward.1} parent=0 // pred_check_branch
    %15 = sbr.rel (0) target = $region5
  $region4: #{starnet_forward.1} parent=0 // pred_region
    _
  $region5: #{starnet_forward.1} parent=0 // pred_fallthru
    _
  // Predicated region
  $region6: #{starnet_forward.1} parent=0 // pred_check
    _
  $region7: #{starnet_forward.1} parent=0 // pred_check_branch
    %17 = sbr.rel (0) target = $region9
  $region8: #{starnet_forward.1} parent=0 // pred_region
    _
  $region9: #{starnet_forward.1} parent=0 // pred_fallthru
    _
  // Predicated region
  $region10: #{starnet_forward.1} parent=0 // pred_check
    _
  $region11: #{starnet_forward.1} parent=0 // pred_check_branch
    %19 = sbr.rel (0) target = $region13
  $region12: #{starnet_forward.1} parent=0 // pred_region
    _
  $region13: #{starnet_forward.1} parent=0 // pred_fallthru
    _
  // Predicated region
  $region14: #{starnet_forward.1} parent=0 // pred_check
    _
  $region15: #{starnet_forward.1} parent=0 // pred_check_branch
    %21 = sbr.rel (0) target = $region17
  $region16: #{starnet_forward.1} parent=0 // pred_region
    _
  $region17: #{starnet_forward.1} parent=0 // pred_fallthru
    _
  // Predicated region
  $region18: #{starnet_forward.1} parent=0 // pred_check
    _
  $region19: #{starnet_forward.1} parent=0 // pred_check_branch
    %23 = sbr.rel (0) target = $region21
  $region20: #{starnet_forward.1} parent=0 // pred_region
    _
  $region21: #{starnet_forward.1} parent=0 // pred_fallthru
    _
  // Predicated region
  $region22: #{starnet_forward.1} parent=0 // pred_check
    _
  $region23: #{starnet_forward.1} parent=0 // pred_check_branch
    %25 = sbr.rel (0) target = $region25
  $region24: #{starnet_forward.1} parent=0 // pred_region
    _
  $region25: #{starnet_forward.1} parent=0 // pred_fallthru
    _
  // Predicated region
  $region26: #{starnet_forward.1} parent=0 // pred_check
    _
  $region27: #{starnet_forward.1} parent=0 // pred_check_branch
    %27 = sbr.rel (0) target = $region29
  $region28: #{starnet_forward.1} parent=0 // pred_region
    _
  $region29: #{starnet_forward.1} parent=0 // pred_fallthru
    _
  // Predicated region
  $region30: #{starnet_forward.1} parent=0 // pred_check
    _
  $region31: #{starnet_forward.1} parent=0 // pred_check_branch
    %29 = sbr.rel (0) target = $region33
  $region32: #{starnet_forward.1} parent=0 // pred_region
    _
  $region33: #{starnet_forward.1} parent=0 // pred_fallthru
    _
  // Predicated region
  $region34: #{starnet_forward.1} parent=0 // pred_check
    _
  $region35: #{starnet_forward.1} parent=0 // pred_check_branch
    %31 = sbr.rel (0) target = $region37
  $region36: #{starnet_forward.1} parent=0 // pred_region
    _
  $region37: #{starnet_forward.1} parent=0 // pred_fallthru
    _
  %v33 = vld [vmem:[%s0] sm:$0xff]
  %v34 = vpack.c.bf16 %v33, %v33
  %v35 = vld [vmem:[%s1] sm:$0xf]
  %v36 = vld [vmem:[%s2] sm:$0x1]
  %v38 = vperm.slane %v36, 0
  %vm40 = vcmask 64512
  %v42 = vsel %vm40, %v34, 0
  %vm44 = vcmask 1043456
  %v46 = vsel %vm44, %v35, 0
  %48 = vmatpush.bf16.msra.mxu0 0
  %49 = vmatpush.bf16.msra.mxu0 0
  %50 = vmatpush.bf16.msra.mxu0 0
  %51 = vmatpush.bf16.msra.mxu0 0
  %52 = vmatpush.bf16.msra.mxu0 0
  %53 = vmatpush.bf16.msra.mxu0 0
  %54 = vmatpush.bf16.msra.mxu0 0
  %55 = vmatpush.bf16.msra.mxu0 %v46
  %56 = vmatmul.bf16.gmra.mxu0 %v42
  %v57 = vpop.f32.mrf.mxu0
  %v58 = vadd.f32 %v38, %v57
  %v59 = vpop.f32.mrf.mxu0
  %60 = vdwg.mxu0
  %v61 = vmax.f32 %v58, 0.0
  %v62 = vpack.c.bf16 %v61, %v61
  %v63 = vld [vmem:[%s3] sm:$0xf]
  %v64 = vld [vmem:[%s3 + $0x4] sm:$0xf]
  %v65 = vld [vmem:[%s3 + $0x8] sm:$0xf]
  %v66 = vld [vmem:[%s3 + $0xc] sm:$0xf]
  %v67 = vld [vmem:[%s3 + $0x10] sm:$0xf]
  %v68 = vld [vmem:[%s3 + $0x14] sm:$0xf]
  %v69 = vld [vmem:[%s3 + $0x18] sm:$0xf]
  %v70 = vld [vmem:[%s3 + $0x1c] sm:$0xf]
  %v71 = vld [vmem:[%s4] sm:$0x1]
  %v73 = vperm.slane %v71, 0
  %v83 = vunpack.c.l.b16 %v63
  %v84 = vunpack.c.l.b16 %v64
  %v85 = vunpack.c.l.b16 %v65
  %v86 = vunpack.c.l.b16 %v66
  %v87 = vunpack.c.l.b16 %v67
  %v88 = vunpack.c.l.b16 %v68
  %v89 = vunpack.c.l.b16 %v69
  %v90 = vunpack.c.l.b16 %v70
  %v91 = vpack.c.b16 %v84, %v83
  %v92 = vpack.c.b16 %v86, %v85
  %v93 = vpack.c.b16 %v88, %v87
  %v94 = vpack.c.b16 %v90, %v89
  %vm99 = vcmask 523264
  %v101 = vsel %vm99, %v62, 0
  %103 = vmatpush.bf16.msra.mxu0 0
  %104 = vmatpush.bf16.msra.mxu0 0
  %105 = vmatpush.bf16.msra.mxu0 0
  %106 = vmatpush.bf16.msra.mxu0 0
  %107 = vmatpush.bf16.msra.mxu0 %v94
  %108 = vmatpush.bf16.msra.mxu0 %v93
  %109 = vmatpush.bf16.msra.mxu0 %v92
  %110 = vmatpush.bf16.msra.mxu0 %v91
  %111 = vmatmul.bf16.gmra.mxu0 %v101
  %v112 = vpop.f32.mrf.mxu0
  %v113 = vadd.f32 %v73, %v112
  %v114 = vpop.f32.mrf.mxu0
  %115 = vdwg.mxu0
  %v116 = vmax.f32 %v113, 0.0
  %v117 = vpack.c.bf16 %v116, %v116
  %v118 = vld [vmem:[%s5] sm:$0xf]
  %v119 = vld [vmem:[%s5 + $0x4] sm:$0xf]
  %v120 = vld [vmem:[%s5 + $0x8] sm:$0xf]
  %v121 = vld [vmem:[%s5 + $0xc] sm:$0xf]
  %v122 = vld [vmem:[%s5 + $0x10] sm:$0xf]
  %v123 = vld [vmem:[%s5 + $0x14] sm:$0xf]
  %v124 = vld [vmem:[%s5 + $0x18] sm:$0xf]
  %v125 = vld [vmem:[%s5 + $0x1c] sm:$0xf]
  %v126 = vld [vmem:[%s5 + $0x20] sm:$0xf]
  %v127 = vld [vmem:[%s5 + $0x24] sm:$0xf]
  %v128 = vld [vmem:[%s5 + $0x28] sm:$0xf]
  %v129 = vld [vmem:[%s5 + $0x2c] sm:$0xf]
  %v130 = vld [vmem:[%s5 + $0x30] sm:$0xf]
  %v131 = vld [vmem:[%s5 + $0x34] sm:$0xf]
  %v132 = vld [vmem:[%s5 + $0x38] sm:$0xf]
  %v133 = vld [vmem:[%s5 + $0x3c] sm:$0xf]
  %v134 = vld [vmem:[%s6] sm:$0x1]
  %v136 = vperm.slane %v134, 0
  %v154 = vunpack.c.l.b16 %v118
  %v155 = vunpack.c.l.b16 %v119
  %v156 = vunpack.c.l.b16 %v120
  %v157 = vunpack.c.l.b16 %v121
  %v158 = vunpack.c.l.b16 %v122
  %v159 = vunpack.c.l.b16 %v123
  %v160 = vunpack.c.l.b16 %v124
  %v161 = vunpack.c.l.b16 %v125
  %v162 = vunpack.c.l.b16 %v126
  %v163 = vunpack.c.l.b16 %v127
  %v164 = vunpack.c.l.b16 %v128
  %v165 = vunpack.c.l.b16 %v129
  %v166 = vunpack.c.l.b16 %v130
  %v167 = vunpack.c.l.b16 %v131
  %v168 = vunpack.c.l.b16 %v132
  %v169 = vunpack.c.l.b16 %v133
  %v170 = vpack.c.b16 %v155, %v154
  %v171 = vpack.c.b16 %v157, %v156
  %v172 = vpack.c.b16 %v159, %v158
  %v173 = vpack.c.b16 %v161, %v160
  %v174 = vpack.c.b16 %v163, %v162
  %v175 = vpack.c.b16 %v165, %v164
  %v176 = vpack.c.b16 %v167, %v166
  %v177 = vpack.c.b16 %v169, %v168
  %186 = vmatpush.bf16.msra.mxu0 %v177
  %187 = vmatpush.bf16.msra.mxu0 %v176
  %188 = vmatpush.bf16.msra.mxu0 %v175
  %189 = vmatpush.bf16.msra.mxu0 %v174
  %190 = vmatpush.bf16.msra.mxu0 %v173
  %191 = vmatpush.bf16.msra.mxu0 %v172
  %192 = vmatpush.bf16.msra.mxu0 %v171
  %193 = vmatpush.bf16.msra.mxu0 %v170
  %194 = vmatmul.bf16.gmra.mxu0 %v117
  %v195 = vpop.f32.mrf.mxu0
  %v196 = vadd.f32 %v136, %v195
  %v197 = vpop.f32.mrf.mxu0
  %198 = vdwg.mxu0
  %v199 = vmax.f32 %v196, 0.0
  %v200 = vpack.c.bf16 %v199, %v199
  %v201 = vld [vmem:[%s7] sm:$0xf]
  %v202 = vld [vmem:[%s7 + $0x4] sm:$0xf]
  %v203 = vld [vmem:[%s7 + $0x8] sm:$0xf]
  %v204 = vld [vmem:[%s7 + $0xc] sm:$0xf]
  %v205 = vld [vmem:[%s7 + $0x10] sm:$0xf]
  %v206 = vld [vmem:[%s7 + $0x14] sm:$0xf]
  %v207 = vld [vmem:[%s7 + $0x18] sm:$0xf]
  %v208 = vld [vmem:[%s7 + $0x1c] sm:$0xf]
  %v209 = vld [vmem:[%s8] sm:$0x1]
  %v211 = vperm.slane %v209, 0
  %v221 = vunpack.c.l.b16 %v201
  %v222 = vunpack.c.l.b16 %v202
  %v223 = vunpack.c.l.b16 %v203
  %v224 = vunpack.c.l.b16 %v204
  %v225 = vunpack.c.l.b16 %v205
  %v226 = vunpack.c.l.b16 %v206
  %v227 = vunpack.c.l.b16 %v207
  %v228 = vunpack.c.l.b16 %v208
  %v229 = vpack.c.b16 %v222, %v221
  %v230 = vpack.c.b16 %v224, %v223
  %v231 = vpack.c.b16 %v226, %v225
  %v232 = vpack.c.b16 %v228, %v227
  %v238 = vsel %vm99, %v200, 0
  %240 = vmatpush.bf16.msra.mxu0 0
  %241 = vmatpush.bf16.msra.mxu0 0
  %242 = vmatpush.bf16.msra.mxu0 0
  %243 = vmatpush.bf16.msra.mxu0 0
  %244 = vmatpush.bf16.msra.mxu0 %v232
  %245 = vmatpush.bf16.msra.mxu0 %v231
  %246 = vmatpush.bf16.msra.mxu0 %v230
  %247 = vmatpush.bf16.msra.mxu0 %v229
  %248 = vmatmul.bf16.gmra.mxu0 %v238
  %v249 = vpop.f32.mrf.mxu0
  %v250 = vadd.f32 %v211, %v249
  %v251 = vpop.f32.mrf.mxu0
  %252 = vdwg.mxu0
  %253 = vst [vmem:[%s9] sm:$0xff] %v250
  // Predicated region
  $region38: #{starnet_forward.1} parent=0 // pred_check
    _
  $region39: #{starnet_forward.1} parent=0 // pred_check_branch
    %255 = sbr.rel (0) target = $region41
  $region40: #{starnet_forward.1} parent=0 // pred_region
    _
  $region41: #{starnet_forward.1} parent=0 // pred_fallthru
    _
  // Predicated region
  $region42: #{starnet_forward.1} parent=0 // pred_check
    _
  $region43: #{starnet_forward.1} parent=0 // pred_check_branch
    %257 = sbr.rel (0) target = $region45
  $region44: #{starnet_forward.1} parent=0 // pred_region
    _
  $region45: #{starnet_forward.1} parent=0 // pred_fallthru
    _

</llo_original>
